<compile_context>
chip_gen: v5e
topology: v5e:2x2
jax: 0.10.0
libtpu: 0.0.40
codegen_flags: <defaults>
</compile_context>

<pallas_src>
import functools

import jax
import jax.numpy as jnp
from jax import lax
from jax.experimental import pallas as pl
from jax.experimental.pallas import tpu as pltpu


# ---------------------------------------------------------------------------
# Kernel 1: fused QKV projection (q pre-scaled by 1/sqrt(d_out)).
# ---------------------------------------------------------------------------
def _qkv_proj_kernel(x_ref, w_ref, q_ref, k_ref, v_ref, *, d_pad, scale):
    # x_ref: (tt, d_in); w_ref: (d_in, 3*d_pad) — one MXU matmul, f32 accumulate.
    qkv = jnp.dot(x_ref[...], w_ref[...], preferred_element_type=jnp.float32)
    q_ref[...] = (qkv[:, :d_pad] * scale).astype(q_ref.dtype)
    k_ref[...] = qkv[:, d_pad:2 * d_pad].astype(k_ref.dtype)
    v_ref[...] = qkv[:, 2 * d_pad:].astype(v_ref.dtype)


# ---------------------------------------------------------------------------
# Kernel 2: flash-style causal attention with online softmax.
# ---------------------------------------------------------------------------
def _flash_attn_kernel(q_ref, k_ref, v_ref, o_ref, m_scr, l_scr, acc_scr,
                       *, tq, tk):
    qi = pl.program_id(1)
    ki = pl.program_id(2)

    @pl.when(ki == 0)
    def _():
        m_scr[...] = jnp.full_like(m_scr, -jnp.inf)
        l_scr[...] = jnp.zeros_like(l_scr)
        acc_scr[...] = jnp.zeros_like(acc_scr)

    # Skip kv tiles entirely above the causal diagonal (DMA for these tiles is
    # also skipped via the clamped index_map in the wrapper).
    @pl.when(ki * tk <= qi * tq + (tq - 1))
    def _():
        q = q_ref[...]                                   # (tq, d_pad), pre-scaled
        k = k_ref[...]                                   # (tk, d_pad)
        # scores = q @ k^T without materializing k.T; f32 accumulation.
        s = lax.dot_general(q, k,
                            dimension_numbers=(((1,), (1,)), ((), ())),
                            preferred_element_type=jnp.float32)   # (tq, tk)

        # Slim causal mask: (tq,1) x (1,tk) iotas, broadcast in the compare.
        row = qi * tq + lax.broadcasted_iota(jnp.int32, (tq, 1), 0)
        col = ki * tk + lax.broadcasted_iota(jnp.int32, (1, tk), 1)
        s = jnp.where(col > row, -jnp.inf, s)

        m_prev = m_scr[...]                              # (tq, 128) lane-dense
        l_prev = l_scr[...]                              # (tq, 128)
        s_max = jnp.max(s, axis=-1, keepdims=True)       # (tq, 1)
        m_next = jnp.maximum(m_prev, s_max)              # (tq, 128)
        alpha = jnp.exp(m_prev - m_next)                 # (tq, 128)
        p = jnp.exp(s - m_next[:, :1])                   # (tq, tk) f32
        l_scr[...] = alpha * l_prev + jnp.sum(p, axis=-1, keepdims=True)
        m_scr[...] = m_next
        acc_scr[...] = alpha[:, :1] * acc_scr[...] + jnp.dot(
            p.astype(v_ref.dtype), v_ref[...],
            preferred_element_type=jnp.float32)

    @pl.when(ki == pl.num_programs(2) - 1)
    def _():
        l = l_scr[...][:, :1]                            # (tq, 1)
        r = pl.reciprocal(l, approx=True)                # EUP vrcp
        r = r * (2.0 - l * r)                            # one Newton step
        o_ref[...] = (acc_scr[...] * r).astype(o_ref.dtype)


# ---------------------------------------------------------------------------
# Wrapper
# ---------------------------------------------------------------------------
def _round_up(x, m):
    return ((x + m - 1) // m) * m


def _sublane(dtype):
    """Second-minor tile quantum for a dtype (8 for 4B, 16 for 2B, 32 for 1B)."""
    return {4: 8, 2: 16, 1: 32}[jnp.dtype(dtype).itemsize]


def causal_attention(x, w_query, w_key, w_value, *, qkv_dtype=jnp.bfloat16):
    """x: (B, T, d_in); w_*: (d_out, d_in) PyTorch nn.Linear weight layout."""
    B, T, d_in = x.shape
    d_out = w_query.shape[0]
    out_dtype = x.dtype

    # Lane-dense padded head dim (multiple of 128); zero padding is exact.
    d_pad = max(128, _round_up(d_out, 128))

    # dtype-aware sequence tiling; pad T instead of falling back to a giant tile.
    sub = max(_sublane(x.dtype), _sublane(qkv_dtype), _sublane(out_dtype))
    if T <= 512:
        T_pad = _round_up(T, sub)
        tt = tq = tk = T_pad
    else:
        T_pad = _round_up(T, 512)         # 512 is a multiple of 8/16/32
        tt, tq, tk = 512, 512, 256

    x_p = x if T_pad == T else jnp.pad(x, ((0, 0), (0, T_pad - T), (0, 0)))

    # Fused, transposed, zero-padded weight: (d_in, 3*d_pad).
    def _prep(w):
        wt = w.T.astype(x.dtype)
        if d_pad != d_out:
            wt = jnp.pad(wt, ((0, 0), (0, d_pad - d_out)))
        return wt

    w_qkv = jnp.concatenate([_prep(w_query), _prep(w_key), _prep(w_value)],
                            axis=1)
    scale = 1.0 / float(d_out) ** 0.5     # true d_out, folded into q

    # ---- QKV projection ---------------------------------------------------
    nt = T_pad // tt
    q, k, v = pl.pallas_call(
        functools.partial(_qkv_proj_kernel, d_pad=d_pad, scale=scale),
        out_shape=(
            jax.ShapeDtypeStruct((B, T_pad, d_pad), qkv_dtype),
            jax.ShapeDtypeStruct((B, T_pad, d_pad), qkv_dtype),
            jax.ShapeDtypeStruct((B, T_pad, d_pad), qkv_dtype),
        ),
        grid_spec=pltpu.PrefetchScalarGridSpec(
            num_scalar_prefetch=0,
            grid=(B, nt),
            in_specs=[
                pl.BlockSpec((None, tt, d_in), lambda b, i: (b, i, 0)),
                pl.BlockSpec((d_in, 3 * d_pad), lambda b, i: (0, 0)),
            ],
            out_specs=[
                pl.BlockSpec((None, tt, d_pad), lambda b, i: (b, i, 0)),
                pl.BlockSpec((None, tt, d_pad), lambda b, i: (b, i, 0)),
                pl.BlockSpec((None, tt, d_pad), lambda b, i: (b, i, 0)),
            ],
        ),
        compiler_params=pltpu.CompilerParams(
            dimension_semantics=("parallel", "parallel"),
            vmem_limit_bytes=48 * 1024 * 1024,
        ),
    )(x_p, w_qkv)

    # ---- Flash attention ----------------------------------------------------
    nq = T_pad // tq
    nk = T_pad // tk

    def q_map(b, i, j):
        return (b, i, 0)

    def kv_map(b, i, j):
        # Clamp the kv block index so fully-masked tiles are never DMA'd
        # (repeated block index => Pallas skips the fetch).
        return (b, jnp.minimum(j, (i * tq + tq - 1) // tk), 0)

    out_pad = pl.pallas_call(
        functools.partial(_flash_attn_kernel, tq=tq, tk=tk),
        out_shape=jax.ShapeDtypeStruct((B, T_pad, d_pad), out_dtype),
        grid_spec=pltpu.PrefetchScalarGridSpec(
            num_scalar_prefetch=0,
            grid=(B, nq, nk),
            in_specs=[
                pl.BlockSpec((None, tq, d_pad), q_map),
                pl.BlockSpec((None, tk, d_pad), kv_map),
                pl.BlockSpec((None, tk, d_pad), kv_map),
            ],
            out_specs=pl.BlockSpec((None, tq, d_pad), q_map),
            scratch_shapes=[
                pltpu.VMEM((tq, 128), jnp.float32),      # running max (lane-dense)
                pltpu.VMEM((tq, 128), jnp.float32),      # running sum (lane-dense)
                pltpu.VMEM((tq, d_pad), jnp.float32),    # output accumulator
            ],
        ),
        compiler_params=pltpu.CompilerParams(
            dimension_semantics=("parallel", "parallel", "arbitrary"),
            vmem_limit_bytes=48 * 1024 * 1024,
        ),
    )(q, k, v)

    return out_pad[:, :T, :d_out]


# ---------------------------------------------------------------------------
# Pure-JAX reference (matches the PyTorch forward, dropout p=0 / eval).
# ---------------------------------------------------------------------------
def _reference(x, w_query, w_key, w_value):
    q = x @ w_query.T
    k = x @ w_key.T
    v = x @ w_value.T
    scores = jnp.einsum("btd,bsd->bts", q, k)
    T = x.shape[1]
    mask = jnp.triu(jnp.ones((T, T), dtype=bool), k=1)
    scores = jnp.where(mask[None], -jnp.inf, scores)
    w = jax.nn.softmax(scores / jnp.sqrt(jnp.float32(k.shape[-1])), axis=-1)
    return w @ v


if __name__ == "__main__":
    # Small shapes consistent with the module: batch=2, seq=8, d_in=32, d_out=32.
    B, T, d_in, d_out = 2, 8, 32, 32
    key = jax.random.PRNGKey(0)
    kx, kq, kk, kv = jax.random.split(key, 4)

    x = jax.random.normal(kx, (B, T, d_in), dtype=jnp.float32)
    # Deterministic parameter init (PyTorch nn.Linear weight shape: (d_out, d_in)).
    init_scale = 1.0 / float(d_in) ** 0.5
    w_query = jax.random.uniform(kq, (d_out, d_in), jnp.float32, -init_scale, init_scale)
    w_key = jax.random.uniform(kk, (d_out, d_in), jnp.float32, -init_scale, init_scale)
    w_value = jax.random.uniform(kv, (d_out, d_in), jnp.float32, -init_scale, init_scale)

    ref = _reference(x, w_query, w_key, w_value)

    # f32 intermediates: tight correctness check.
    out_f32 = causal_attention(x, w_query, w_key, w_value, qkv_dtype=jnp.float32)
    out_f32 = jax.block_until_ready(out_f32)
    assert out_f32.shape == (B, T, d_out)
    assert jnp.allclose(out_f32, ref, atol=1e-3, rtol=1e-3), "f32 path mismatch vs reference"

    # bf16 intermediates (default fast path): looser tolerance for bf16 storage.
    out_bf16 = causal_attention(x, w_query, w_key, w_value)
    out_bf16 = jax.block_until_ready(out_bf16)
    assert out_bf16.shape == (B, T, d_out)
    assert jnp.allclose(out_bf16, ref, atol=5e-2, rtol=5e-2), "bf16 path mismatch vs reference"

    print("KERNEL_OK")
</pallas_src>

<mosaic_0001>
module attributes {stable_mosaic.version = 11 : i64} {
  func.func @_qkv_proj_kernel(%arg0: i32, %arg1: i32, %arg2: memref<1x8x32xf32, #tpu.memory_space<vmem>>, %arg3: memref<32x384xf32, #tpu.memory_space<vmem>>, %arg4: memref<1x8x128xf32, #tpu.memory_space<vmem>>, %arg5: memref<1x8x128xf32, #tpu.memory_space<vmem>>, %arg6: memref<1x8x128xf32, #tpu.memory_space<vmem>>) attributes {dimension_semantics = [#tpu.dimension_semantics<parallel>, #tpu.dimension_semantics<parallel>], iteration_bounds = array<i64: 2, 1>, scalar_prefetch = 0 : i64, scratch_operands = 0 : i64, tpu.core_type = #tpu.core_type<tc>, window_params = [{transform_indices = @transform_0, window_bounds = array<i64: 1, 8, 32>}, {pipeline_mode = #tpu.pipeline_mode<synchronous>, transform_indices = @transform_1, window_bounds = array<i64: 32, 384>}, {transform_indices = @transform_2, window_bounds = array<i64: 1, 8, 128>}, {transform_indices = @transform_3, window_bounds = array<i64: 1, 8, 128>}, {transform_indices = @transform_4, window_bounds = array<i64: 1, 8, 128>}]} {
    %c0 = arith.constant 0 : index
    %c0_0 = arith.constant 0 : index
    %c0_1 = arith.constant 0 : index
    %0 = vector.load %arg2[%c0, %c0_0, %c0_1] : memref<1x8x32xf32, #tpu.memory_space<vmem>>, vector<1x8x32xf32>
    %1 = vector.shape_cast %0 : vector<1x8x32xf32> to vector<8x32xf32>
    %c0_2 = arith.constant 0 : index
    %c0_3 = arith.constant 0 : index
    %2 = vector.load %arg3[%c0_2, %c0_3] : memref<32x384xf32, #tpu.memory_space<vmem>>, vector<32x384xf32>
    %cst = arith.constant dense<0.000000e+00> : vector<8x384xf32>
    %3 = tpu.matmul %1, %2, %cst {dimension_numbers = #tpu.dot_dimension_numbers<[1], [0], [0], [1], [0, 0, 1, 1], [], []>} : vector<8x32xf32>, vector<32x384xf32>, vector<8x384xf32> -> vector<8x384xf32>
    %4 = vector.extract_strided_slice %3 {offsets = [0, 0], sizes = [8, 128], strides = [1, 1]} : vector<8x384xf32> to vector<8x128xf32>
    %cst_4 = arith.constant 0.176776692 : f32
    %5 = vector.broadcast %cst_4 : f32 to vector<8x128xf32>
    %6 = arith.mulf %4, %5 : vector<8x128xf32>
    %c0_5 = arith.constant 0 : index
    %c0_6 = arith.constant 0 : index
    %c0_7 = arith.constant 0 : index
    %7 = vector.load %arg4[%c0_5, %c0_6, %c0_7] : memref<1x8x128xf32, #tpu.memory_space<vmem>>, vector<1x8x128xf32>
    %8 = vector.shape_cast %7 : vector<1x8x128xf32> to vector<8x128xf32>
    %9 = vector.shape_cast %6 : vector<8x128xf32> to vector<1x8x128xf32>
    tpu.vector_store %arg4[%c0_5, %c0_6, %c0_7], %9 {strides = array<i32>} : memref<1x8x128xf32, #tpu.memory_space<vmem>>, vector<1x8x128xf32>,
    %10 = vector.extract_strided_slice %3 {offsets = [0, 128], sizes = [8, 128], strides = [1, 1]} : vector<8x384xf32> to vector<8x128xf32>
    %c0_8 = arith.constant 0 : index
    %c0_9 = arith.constant 0 : index
    %c0_10 = arith.constant 0 : index
    %11 = vector.load %arg5[%c0_8, %c0_9, %c0_10] : memref<1x8x128xf32, #tpu.memory_space<vmem>>, vector<1x8x128xf32>
    %12 = vector.shape_cast %11 : vector<1x8x128xf32> to vector<8x128xf32>
    %13 = vector.shape_cast %10 : vector<8x128xf32> to vector<1x8x128xf32>
    tpu.vector_store %arg5[%c0_8, %c0_9, %c0_10], %13 {strides = array<i32>} : memref<1x8x128xf32, #tpu.memory_space<vmem>>, vector<1x8x128xf32>,
    %14 = vector.extract_strided_slice %3 {offsets = [0, 256], sizes = [8, 128], strides = [1, 1]} : vector<8x384xf32> to vector<8x128xf32>
    %c0_11 = arith.constant 0 : index
    %c0_12 = arith.constant 0 : index
    %c0_13 = arith.constant 0 : index
    %15 = vector.load %arg6[%c0_11, %c0_12, %c0_13] : memref<1x8x128xf32, #tpu.memory_space<vmem>>, vector<1x8x128xf32>
    %16 = vector.shape_cast %15 : vector<1x8x128xf32> to vector<8x128xf32>
    %17 = vector.shape_cast %14 : vector<8x128xf32> to vector<1x8x128xf32>
    tpu.vector_store %arg6[%c0_11, %c0_12, %c0_13], %17 {strides = array<i32>} : memref<1x8x128xf32, #tpu.memory_space<vmem>>, vector<1x8x128xf32>,
    return
  }
  func.func @transform_0(%arg0: i32, %arg1: i32) -> (i32, i32, i32) {
    %c0_i32 = arith.constant 0 : i32
    %c0_i32_0 = arith.constant 0 : i32
    return %arg0, %arg1, %c0_i32 : i32, i32, i32
  }
  func.func @transform_1(%arg0: i32, %arg1: i32) -> (i32, i32) {
    %c0_i32 = arith.constant 0 : i32
    %c0_i32_0 = arith.constant 0 : i32
    %c0_i32_1 = arith.constant 0 : i32
    return %c0_i32, %c0_i32_0 : i32, i32
  }
  func.func @transform_2(%arg0: i32, %arg1: i32) -> (i32, i32, i32) {
    %c0_i32 = arith.constant 0 : i32
    %c0_i32_0 = arith.constant 0 : i32
    return %arg0, %arg1, %c0_i32 : i32, i32, i32
  }
  func.func @transform_3(%arg0: i32, %arg1: i32) -> (i32, i32, i32) {
    %c0_i32 = arith.constant 0 : i32
    %c0_i32_0 = arith.constant 0 : i32
    return %arg0, %arg1, %c0_i32 : i32, i32, i32
  }
  func.func @transform_4(%arg0: i32, %arg1: i32) -> (i32, i32, i32) {
    %c0_i32 = arith.constant 0 : i32
    %c0_i32_0 = arith.constant 0 : i32
    return %arg0, %arg1, %c0_i32 : i32, i32, i32
  }
}

</mosaic_0001>

<llo_original>
// kernel: tpu_custom_call.1
$region0: #{tpu_custom_call.1}
  #allocation0 [shape = 'u32[]', space=smem, size = 0x4, offset = 0x4, fixed_abs, tag = 'smem constant byte address 0x4 - core index']
  #allocation1 [shape = 'u32[72,128]{1,0:T(1,128)}', space=vmem, size = 0x9000, scoped, tag = 'internal scratch']
  %s0 = inlined_call_operand.hbm [shape: f32[2,8,32], index: 0, kind: input, shape index: {}]
  %s1 = inlined_call_operand.hbm [shape: f32[32,384], index: 1, kind: input, shape index: {}]
  %s2 = inlined_call_operand.hbm [shape: f32[2,8,128], index: 2, kind: output, shape index: {0}]
  %s3 = inlined_call_operand.hbm [shape: f32[2,8,128], index: 3, kind: output, shape index: {1}]
  %s4 = inlined_call_operand.hbm [shape: f32[2,8,128], index: 4, kind: output, shape index: {2}]
  %5 = xla_tuple %s2, %s3, %s4
  %s6 = sld [smem:[#allocation0]]
  $region65: #{tpu_custom_call.1} parent=0
    _
  %s8 = ssub.s32 1, %s6
  %s9 = scalar_select 0, %s8, %s6
  $region1: #{tpu_custom_call.1} parent=0
    #allocation2 [shape = 'u8[8192]{0}', space=vmem, size = 0x2000, scoped, tag = 'input window, operand 0']
    #allocation3 [shape = 's32[2]{0}', space=sflag, size = 0x8, scoped, tag = 'scoped memory for tpu_custom_call.1']
    #allocation4 [shape = 's32[2]{0}', space=sflag, size = 0x8, scoped, tag = 'scoped memory for tpu_custom_call.1']
    #allocation5 [shape = 'u8[49152]{0}', space=vmem, size = 0xc000, scoped, tag = 'input window, operand 1, single buffered']
    #allocation6 [shape = 's32[1]{0}', space=sflag, size = 0x4, scoped, tag = 'scoped memory for tpu_custom_call.1']
    #allocation7 [shape = 'u8[8192]{0}', space=vmem, size = 0x2000, scoped, tag = 'output window, operand 0']
    #allocation8 [shape = 'u8[8192]{0}', space=vmem, size = 0x2000, scoped, tag = 'output window, operand 1']
    #allocation9 [shape = 's32[2]{0}', space=sflag, size = 0x8, scoped, tag = 'scoped memory for tpu_custom_call.1']
    #allocation10 [shape = 'u8[8192]{0}', space=vmem, size = 0x2000, scoped, tag = 'output window, operand 2']
    %10 = vsyncpa [#allocation3], 0
    %s11 = scalar_lea.sflag [#allocation3], 1
    %12 = vsyncpa %s11, 0
    %13 = vsyncpa [#allocation6], 0
    %14 = vsyncpa [#allocation4], 0
    %s15 = scalar_lea.sflag [#allocation4], 1
    %16 = vsyncpa %s15, 0
    %17 = vsyncpa [#allocation9], 0
    %s18 = scalar_lea.sflag [#allocation9], 1
    %19 = vsyncpa %s18, 0
    loop: start=0, step=1, limit=4
    $region2: #{tpu_custom_call.1} parent=1 // loop_pre_header
      _
    $region3: #{tpu_custom_call.1} parent=1 // loop_header
      %s21 = sphi 0, %s25
      %p22 = scmp.ge.s32.totalorder %s21, 4
      %s28 = sphi 0, %s40
      %s29 = sphi 0, %s36
      %s30 = sphi 0, %s28
      %s31 = sphi 0, %s29
      %s32 = sphi 0, %s30
      %s33 = sphi 0, %s31
      %s45 = sphi 0, %s47
      %s48 = sphi 0, %s45
      %s49 = sphi 0, %s48
      %s65 = sphi 0, %s49
      %s69 = sphi 0, %s69
      %s71 = sphi 0, %s69
      %s72 = sphi 0, %s71
      %s86 = sphi 0, %s72
      %s94 = sphi 0, %s96
      %s97 = sphi 0, %s94
      %s98 = sphi 0, %s97
      %s114 = sphi 0, %s98
      %s122 = sphi 0, %s124
      %s125 = sphi 0, %s122
      %s126 = sphi 0, %s125
      %s142 = sphi 0, %s126
      %s150 = sphi 0, %s152
      %s153 = sphi 0, %s150
      %s154 = sphi 0, %s153
      %s170 = sphi 0, %s154
    $region4: #{tpu_custom_call.1} parent=1 // loop_header_branch
      %24 = sbr.rel (%p22) target = $region8
    $region5: #{tpu_custom_call.1} parent=1 // loop_body
      %s26 = ssub.s32 %s21, 1
      %s27 = ssub.s32 %s21, 2
      %s34 = sadd.s32 1, %s29
      %p35 = scmp.ge.s32.totalorder %s34, 1
      %s36 = scalar_select %p35, 0, %s34
      %s37 = sadd.s32 1, %s28
      %s38 = scalar_select %p35, %s37, %s28
      %p39 = scmp.ge.s32.totalorder %s38, 2
      %s40 = scalar_select %p39, 0, %s38
      %s41 = ssub.s32 %s28, %s40
      %s42 = ssub.s32 %s29, %s36
      %s43 = sor.u32 %s41, %s42
      %p44 = scmp.eq.s32.totalorder %s43, 0
      %s46 = sadd.s32 %s45, 1
      %s47 = scalar_select %p44, %s45, %s46
      %p50 = pneg %p44
      %p51 = scmp.eq.s32.totalorder %s21, 1
      %p52 = por %p50, %p51
      %p53 = scmp.ne.s32.totalorder %s45, %s48
      %p54 = scmp.eq.s32.totalorder %s21, 0
      %p55 = por %p53, %p54
      %p56 = scmp.ne.s32.totalorder %s45, %s48
      %p57 = scmp.eq.s32.totalorder %s26, 1
      %p58 = por %p56, %p57
      %p59 = scmp.ne.s32.totalorder %s48, %s49
      %p60 = scmp.eq.s32.totalorder %s26, 0
      %p61 = por %p59, %p60
      %p62 = scmp.ne.s32.totalorder %s48, %s49
      %p63 = scmp.eq.s32.totalorder %s27, 1
      %p64 = por %p62, %p63
      %p66 = scmp.ne.s32.totalorder %s49, %s65
      %p67 = scmp.eq.s32.totalorder %s27, 0
      %p68 = por %p66, %p67
      %s70 = sadd.s32 %s69, 1
      %p73 = scmp.eq.s32.totalorder %s21, 1
      %p74 = scmp.ne.s32.totalorder %s69, %s71
      %p75 = scmp.eq.s32.totalorder %s21, 0
      %p76 = por %p74, %p75
      %p77 = scmp.ne.s32.totalorder %s69, %s71
      %p78 = scmp.eq.s32.totalorder %s26, 1
      %p79 = por %p77, %p78
      %p80 = scmp.ne.s32.totalorder %s71, %s72
      %p81 = scmp.eq.s32.totalorder %s26, 0
      %p82 = por %p80, %p81
      %p83 = scmp.ne.s32.totalorder %s71, %s72
      %p84 = scmp.eq.s32.totalorder %s27, 1
      %p85 = por %p83, %p84
      %p87 = scmp.ne.s32.totalorder %s72, %s86
      %p88 = scmp.eq.s32.totalorder %s27, 0
      %p89 = por %p87, %p88
      %s90 = ssub.s32 %s28, %s40
      %s91 = ssub.s32 %s29, %s36
      %s92 = sor.u32 %s90, %s91
      %p93 = scmp.eq.s32.totalorder %s92, 0
      %s95 = sadd.s32 %s94, 1
      %s96 = scalar_select %p93, %s94, %s95
      %p99 = pneg %p93
      %p100 = scmp.eq.s32.totalorder %s21, 1
      %p101 = por %p99, %p100
      %p102 = scmp.ne.s32.totalorder %s94, %s97
      %p103 = scmp.eq.s32.totalorder %s21, 0
      %p104 = por %p102, %p103
      %p105 = scmp.ne.s32.totalorder %s94, %s97
      %p106 = scmp.eq.s32.totalorder %s26, 1
      %p107 = por %p105, %p106
      %p108 = scmp.ne.s32.totalorder %s97, %s98
      %p109 = scmp.eq.s32.totalorder %s26, 0
      %p110 = por %p108, %p109
      %p111 = scmp.ne.s32.totalorder %s97, %s98
      %p112 = scmp.eq.s32.totalorder %s27, 1
      %p113 = por %p111, %p112
      %p115 = scmp.ne.s32.totalorder %s98, %s114
      %p116 = scmp.eq.s32.totalorder %s27, 0
      %p117 = por %p115, %p116
      %s118 = ssub.s32 %s28, %s40
      %s119 = ssub.s32 %s29, %s36
      %s120 = sor.u32 %s118, %s119
      %p121 = scmp.eq.s32.totalorder %s120, 0
      %s123 = sadd.s32 %s122, 1
      %s124 = scalar_select %p121, %s122, %s123
      %p127 = pneg %p121
      %p128 = scmp.eq.s32.totalorder %s21, 1
      %p129 = por %p127, %p128
      %p130 = scmp.ne.s32.totalorder %s122, %s125
      %p131 = scmp.eq.s32.totalorder %s21, 0
      %p132 = por %p130, %p131
      %p133 = scmp.ne.s32.totalorder %s122, %s125
      %p134 = scmp.eq.s32.totalorder %s26, 1
      %p135 = por %p133, %p134
      %p136 = scmp.ne.s32.totalorder %s125, %s126
      %p137 = scmp.eq.s32.totalorder %s26, 0
      %p138 = por %p136, %p137
      %p139 = scmp.ne.s32.totalorder %s125, %s126
      %p140 = scmp.eq.s32.totalorder %s27, 1
      %p141 = por %p139, %p140
      %p143 = scmp.ne.s32.totalorder %s126, %s142
      %p144 = scmp.eq.s32.totalorder %s27, 0
      %p145 = por %p143, %p144
      %s146 = ssub.s32 %s28, %s40
      %s147 = ssub.s32 %s29, %s36
      %s148 = sor.u32 %s146, %s147
      %p149 = scmp.eq.s32.totalorder %s148, 0
      %s151 = sadd.s32 %s150, 1
      %s152 = scalar_select %p149, %s150, %s151
      %p155 = pneg %p149
      %p156 = scmp.eq.s32.totalorder %s21, 1
      %p157 = por %p155, %p156
      %p158 = scmp.ne.s32.totalorder %s150, %s153
      %p159 = scmp.eq.s32.totalorder %s21, 0
      %p160 = por %p158, %p159
      %p161 = scmp.ne.s32.totalorder %s150, %s153
      %p162 = scmp.eq.s32.totalorder %s26, 1
      %p163 = por %p161, %p162
      %p164 = scmp.ne.s32.totalorder %s153, %s154
      %p165 = scmp.eq.s32.totalorder %s26, 0
      %p166 = por %p164, %p165
      %p167 = scmp.ne.s32.totalorder %s153, %s154
      %p168 = scmp.eq.s32.totalorder %s27, 1
      %p169 = por %p167, %p168
      %p171 = scmp.ne.s32.totalorder %s154, %s170
      %p172 = scmp.eq.s32.totalorder %s27, 0
      %p173 = por %p171, %p172
      %p174 = scmp.le.s32.totalorder 1, %s21
      %p175 = scmp.lt.s32.totalorder %s21, 3
      %p176 = pnand %p174, %p175
      %p177 = pneg %p176
      // Predicated region
      $region9: #{tpu_custom_call.1} parent=5 // pred_check
        _
      $region10: #{tpu_custom_call.1} parent=5 // pred_check_branch
        %179 = sbr.rel (%p176) target = $region12
      $region11: #{tpu_custom_call.1} parent=5 // pred_region
        %s180 = ssub.s32 %s21, 1
        // Predicated region
        $region13: #{tpu_custom_call.1} parent=11 // pred_check
          %p181 = pneg %p82
        $region14: #{tpu_custom_call.1} parent=11 // pred_check_branch
          %183 = sbr.rel (%p181) target = $region16
        $region15: #{tpu_custom_call.1} parent=11 // pred_region
          %185 = vsyncadd [#allocation6], 0
          %s186 = sshll.u32 %s1, 4
          %s187 = int_to_ptr.hbm [resolvable:$true] %s186
          %s188 = sshll.u32 [#allocation5], 4
          %s189 = int_to_ptr.vmem [resolvable:$true] %s188
          %194 = dma.hbm_to_vmem [thread:$0]  %s187, 1536, %s189, [#allocation6], 384, 384, 24
        $region16: #{tpu_custom_call.1} parent=11 // pred_fallthru
          _
      $region12: #{tpu_custom_call.1} parent=5 // pred_fallthru
        _
      %p195 = scmp.lt.s32.totalorder %s21, 2
      // Predicated region
      $region17: #{tpu_custom_call.1} parent=5 // pred_check
        %p196 = pneg %p195
      $region18: #{tpu_custom_call.1} parent=5 // pred_check_branch
        %198 = sbr.rel (%p196) target = $region20
      $region19: #{tpu_custom_call.1} parent=5 // pred_region
        // Predicated region
        $region21: #{tpu_custom_call.1} parent=19 // pred_check
          %p199 = pneg %p55
        $region22: #{tpu_custom_call.1} parent=19 // pred_check_branch
          %201 = sbr.rel (%p199) target = $region24
        $region23: #{tpu_custom_call.1} parent=19 // pred_region
          %s202 = sand.u32 %s45, 1
          %s203 = scalar_lea.sflag [#allocation3], %s202
          %s204 = sand.u32 %s45, 1
          %s205 = smul.addr %s204, 8
          %s206 = scalar_lea.vmem [#allocation2], %s205
          %208 = vsyncadd %s203, 0
          %s209 = sadd.s32 %s29, %s28
          %s210 = smul.addr %s209, 8
          %s211 = scalar_lea.hbm %s0, %s210
          %s213 = sshll.u32 %s211, 4
          %s214 = int_to_ptr.hbm [resolvable:$true] %s213
          %s215 = sshll.u32 %s206, 4
          %s216 = int_to_ptr.vmem [resolvable:$true] %s215
          %218 = dma.hbm_to_vmem [thread:$0]  %s214, 128, %s216, %s203
        $region24: #{tpu_custom_call.1} parent=19 // pred_fallthru
          _
      $region20: #{tpu_custom_call.1} parent=5 // pred_fallthru
        _
      %p219 = scmp.le.s32.totalorder 1, %s21
      %p220 = scmp.lt.s32.totalorder %s21, 3
      %p221 = pnand %p219, %p220
      %p222 = pneg %p221
      // Predicated region
      $region25: #{tpu_custom_call.1} parent=5 // pred_check
        _
      $region26: #{tpu_custom_call.1} parent=5 // pred_check_branch
        %224 = sbr.rel (%p221) target = $region28
      $region27: #{tpu_custom_call.1} parent=5 // pred_region
        %s225 = ssub.s32 %s21, 1
        %s226 = sand.u32 %s48, 1
        %s227 = scalar_lea.sflag [#allocation3], %s226
        %s228 = sand.u32 %s48, 1
        %s229 = smul.addr %s228, 8
        %s230 = scalar_lea.vmem [#allocation2], %s229
        // Predicated region
        $region29: #{tpu_custom_call.1} parent=27 // pred_check
          %p231 = pneg %p61
        $region30: #{tpu_custom_call.1} parent=27 // pred_check_branch
          %233 = sbr.rel (%p231) target = $region32
        $region31: #{tpu_custom_call.1} parent=27 // pred_region
          %235 = dma.done %s227, 128
        $region32: #{tpu_custom_call.1} parent=27 // pred_fallthru
          _
        // Predicated region
        $region33: #{tpu_custom_call.1} parent=27 // pred_check
          %p236 = pneg %p82
        $region34: #{tpu_custom_call.1} parent=27 // pred_check_branch
          %238 = sbr.rel (%p236) target = $region36
        $region35: #{tpu_custom_call.1} parent=27 // pred_region
          %240 = dma.done [#allocation6], 1536
        $region36: #{tpu_custom_call.1} parent=27 // pred_fallthru
          _
        %s241 = sand.u32 %s48, 1
        %s242 = scalar_lea.sflag [#allocation3], %s241
        %s243 = sand.u32 %s48, 1
        %s244 = smul.addr %s243, 8
        %s245 = scalar_lea.vmem [#allocation2], %s244
        %p246 = pneg %p61
        %p247 = pneg %p58
        %p248 = pneg %p82
        %p249 = pneg %p79
        %p250 = pneg %p110
        %p251 = pneg %p107
        %s252 = sand.u32 %s97, 1
        %s253 = scalar_lea.sflag [#allocation4], %s252
        %s254 = sand.u32 %s97, 1
        %s255 = smul.addr %s254, 8
        %s256 = scalar_lea.vmem [#allocation7], %s255
        %p257 = pneg %p138
        %p258 = pneg %p135
        %s259 = sand.u32 %s26, 1
        %s260 = scalar_lea.sflag [#allocation9], %s259
        %s261 = sand.u32 %s125, 1
        %s262 = smul.addr %s261, 8
        %s263 = scalar_lea.vmem [#allocation8], %s262
        %p264 = pneg %p166
        %p265 = pneg %p163
        %s266 = sand.u32 %s26, 1
        %s267 = scalar_lea.sflag [#allocation9], %s266
        %s268 = sand.u32 %s153, 1
        %s269 = smul.addr %s268, 8
        %s270 = scalar_lea.vmem [#allocation10], %s269
        %v271 = vld [vmem:[%s230] sm:$0xff]
        %v272 = vld [vmem:[#allocation5] sm:$0xff]
        %v273 = vld [vmem:[#allocation5 + $0x8] sm:$0xff]
        %v274 = vld [vmem:[#allocation5 + $0x10] sm:$0xff]
        %v275 = vld [vmem:[#allocation5 + $0x18] sm:$0xff]
        %v276 = vld [vmem:[#allocation5 + $0x20] sm:$0xff]
        %v277 = vld [vmem:[#allocation5 + $0x28] sm:$0xff]
        %v278 = vld [vmem:[#allocation5 + $0x30] sm:$0xff]
        %v279 = vld [vmem:[#allocation5 + $0x38] sm:$0xff]
        %v280 = vld [vmem:[#allocation5 + $0x40] sm:$0xff]
        %v281 = vld [vmem:[#allocation5 + $0x48] sm:$0xff]
        %v282 = vld [vmem:[#allocation5 + $0x50] sm:$0xff]
        %v283 = vld [vmem:[#allocation5 + $0x58] sm:$0xff]
        %vm284 = vcmask 261120
        %v286 = vsel %vm284, %v271, 0
        %288 = vmatpush.msra.mxu0 0.0
        %289 = vmatpush.msra.mxu0 0.0
        %290 = vmatpush.msra.mxu0 0.0
        %291 = vmatpush.msra.mxu0 0.0
        %292 = vmatpush.msra.mxu0 0.0
        %293 = vmatpush.msra.mxu0 0.0
        %294 = vmatpush.msra.mxu0 0.0
        %295 = vmatpush.msra.mxu0 0.0
        %296 = vmatpush.msra.mxu0 0.0
        %297 = vmatpush.msra.mxu0 0.0
        %298 = vmatpush.msra.mxu0 0.0
        %299 = vmatpush.msra.mxu0 0.0
        %300 = vmatpush.msra.mxu0 %v281
        %301 = vmatpush.msra.mxu0 %v278
        %302 = vmatpush.msra.mxu0 %v275
        %303 = vmatpush.msra.mxu0 %v272
        %304 = vmatmul.f32.gmra.mxu0 %v286
        %v305 = vpop.f32.mrf.mxu0
        %v306 = vadd.f32 0.0, %v305
        %307 = vdwg.mxu0
        %308 = vmatpush.msra.mxu0 0.0
        %309 = vmatpush.msra.mxu0 0.0
        %310 = vmatpush.msra.mxu0 0.0
        %311 = vmatpush.msra.mxu0 0.0
        %312 = vmatpush.msra.mxu0 0.0
        %313 = vmatpush.msra.mxu0 0.0
        %314 = vmatpush.msra.mxu0 0.0
        %315 = vmatpush.msra.mxu0 0.0
        %316 = vmatpush.msra.mxu0 0.0
        %317 = vmatpush.msra.mxu0 0.0
        %318 = vmatpush.msra.mxu0 0.0
        %319 = vmatpush.msra.mxu0 0.0
        %320 = vmatpush.msra.mxu0 %v282
        %321 = vmatpush.msra.mxu0 %v279
        %322 = vmatpush.msra.mxu0 %v276
        %323 = vmatpush.msra.mxu0 %v273
        %324 = vmatmul.f32.gmra.mxu0 %v286
        %v325 = vpop.f32.mrf.mxu0
        %v326 = vadd.f32 0.0, %v325
        %327 = vdwg.mxu0
        %328 = vmatpush.msra.mxu0 0.0
        %329 = vmatpush.msra.mxu0 0.0
        %330 = vmatpush.msra.mxu0 0.0
        %331 = vmatpush.msra.mxu0 0.0
        %332 = vmatpush.msra.mxu0 0.0
        %333 = vmatpush.msra.mxu0 0.0
        %334 = vmatpush.msra.mxu0 0.0
        %335 = vmatpush.msra.mxu0 0.0
        %336 = vmatpush.msra.mxu0 0.0
        %337 = vmatpush.msra.mxu0 0.0
        %338 = vmatpush.msra.mxu0 0.0
        %339 = vmatpush.msra.mxu0 0.0
        %340 = vmatpush.msra.mxu0 %v283
        %341 = vmatpush.msra.mxu0 %v280
        %342 = vmatpush.msra.mxu0 %v277
        %343 = vmatpush.msra.mxu0 %v274
        %344 = vmatmul.f32.gmra.mxu0 %v286
        %v345 = vpop.f32.mrf.mxu0
        %v346 = vadd.f32 0.0, %v345
        %347 = vdwg.mxu0
        %v348 = vmul.f32 %v306, 0.17677669
        %349 = vst [vmem:[%s256] sm:$0xff] %v348
        %350 = vst [vmem:[%s263] sm:$0xff] %v326
        %351 = vst [vmem:[%s270] sm:$0xff] %v346
        %s352 = sand.u32 %s97, 1
        %s353 = scalar_lea.sflag [#allocation4], %s352
        %s354 = sand.u32 %s97, 1
        %s355 = smul.addr %s354, 8
        %s356 = scalar_lea.vmem [#allocation7], %s355
        %s357 = sand.u32 %s26, 1
        %s358 = scalar_lea.sflag [#allocation9], %s357
        %s359 = sand.u32 %s125, 1
        %s360 = smul.addr %s359, 8
        %s361 = scalar_lea.vmem [#allocation8], %s360
        %s362 = sand.u32 %s26, 1
        %s363 = scalar_lea.sflag [#allocation9], %s362
        %s364 = sand.u32 %s153, 1
        %s365 = smul.addr %s364, 8
        %s366 = scalar_lea.vmem [#allocation10], %s365
        // Predicated region
        $region37: #{tpu_custom_call.1} parent=27 // pred_check
          %p367 = pneg %p107
        $region38: #{tpu_custom_call.1} parent=27 // pred_check_branch
          %369 = sbr.rel (%p367) target = $region40
        $region39: #{tpu_custom_call.1} parent=27 // pred_region
          %371 = vsyncadd %s353, 0
          %s372 = sadd.s32 %s31, %s30
          %s373 = smul.addr %s372, 8
          %s374 = scalar_lea.hbm %s2, %s373
          %s376 = sshll.u32 %s356, 4
          %s377 = int_to_ptr.vmem [resolvable:$true] %s376
          %s378 = sshll.u32 %s374, 4
          %s379 = int_to_ptr.hbm [resolvable:$true] %s378
          %381 = dma.vmem_to_hbm [thread:$0]  %s377, 128, %s379, %s353
        $region40: #{tpu_custom_call.1} parent=27 // pred_fallthru
          _
        // Predicated region
        $region41: #{tpu_custom_call.1} parent=27 // pred_check
          %p382 = pneg %p135
        $region42: #{tpu_custom_call.1} parent=27 // pred_check_branch
          %384 = sbr.rel (%p382) target = $region44
        $region43: #{tpu_custom_call.1} parent=27 // pred_region
          %386 = vsyncadd %s358, 0
          %s387 = sadd.s32 %s31, %s30
          %s388 = smul.addr %s387, 8
          %s389 = scalar_lea.hbm %s3, %s388
          %s391 = sshll.u32 %s361, 4
          %s392 = int_to_ptr.vmem [resolvable:$true] %s391
          %s393 = sshll.u32 %s389, 4
          %s394 = int_to_ptr.hbm [resolvable:$true] %s393
          %396 = dma.vmem_to_hbm [thread:$0]  %s392, 128, %s394, %s358
        $region44: #{tpu_custom_call.1} parent=27 // pred_fallthru
          _
        // Predicated region
        $region45: #{tpu_custom_call.1} parent=27 // pred_check
          %p397 = pneg %p163
        $region46: #{tpu_custom_call.1} parent=27 // pred_check_branch
          %399 = sbr.rel (%p397) target = $region48
        $region47: #{tpu_custom_call.1} parent=27 // pred_region
          %401 = vsyncadd %s363, 0
          %s402 = sadd.s32 %s31, %s30
          %s403 = smul.addr %s402, 8
          %s404 = scalar_lea.hbm %s4, %s403
          %s406 = sshll.u32 %s366, 4
          %s407 = int_to_ptr.vmem [resolvable:$true] %s406
          %s408 = sshll.u32 %s404, 4
          %s409 = int_to_ptr.hbm [resolvable:$true] %s408
          %411 = dma.vmem_to_hbm [thread:$0]  %s407, 128, %s409, %s363
        $region48: #{tpu_custom_call.1} parent=27 // pred_fallthru
          _
      $region28: #{tpu_custom_call.1} parent=5 // pred_fallthru
        _
      %p412 = scmp.le.s32.totalorder 2, %s21
      // Predicated region
      $region49: #{tpu_custom_call.1} parent=5 // pred_check
        %p413 = pneg %p412
      $region50: #{tpu_custom_call.1} parent=5 // pred_check_branch
        %415 = sbr.rel (%p413) target = $region52
      $region51: #{tpu_custom_call.1} parent=5 // pred_region
        %s416 = ssub.s32 %s21, 2
        // Predicated region
        $region53: #{tpu_custom_call.1} parent=51 // pred_check
          %p417 = pneg %p113
        $region54: #{tpu_custom_call.1} parent=51 // pred_check_branch
          %419 = sbr.rel (%p417) target = $region56
        $region55: #{tpu_custom_call.1} parent=51 // pred_region
          %s420 = sand.u32 %s98, 1
          %s421 = scalar_lea.sflag [#allocation4], %s420
          %s422 = sand.u32 %s98, 1
          %s423 = smul.addr %s422, 8
          %s424 = scalar_lea.vmem [#allocation7], %s423
          %426 = dma.done %s421, 128
        $region56: #{tpu_custom_call.1} parent=51 // pred_fallthru
          _
        // Predicated region
        $region57: #{tpu_custom_call.1} parent=51 // pred_check
          %p427 = pneg %p141
        $region58: #{tpu_custom_call.1} parent=51 // pred_check_branch
          %429 = sbr.rel (%p427) target = $region60
        $region59: #{tpu_custom_call.1} parent=51 // pred_region
          %s430 = sand.u32 %s27, 1
          %s431 = scalar_lea.sflag [#allocation9], %s430
          %s432 = sand.u32 %s126, 1
          %s433 = smul.addr %s432, 8
          %s434 = scalar_lea.vmem [#allocation8], %s433
          %436 = dma.done %s431, 128
        $region60: #{tpu_custom_call.1} parent=51 // pred_fallthru
          _
        // Predicated region
        $region61: #{tpu_custom_call.1} parent=51 // pred_check
          %p437 = pneg %p169
        $region62: #{tpu_custom_call.1} parent=51 // pred_check_branch
          %439 = sbr.rel (%p437) target = $region64
        $region63: #{tpu_custom_call.1} parent=51 // pred_region
          %s440 = sand.u32 %s27, 1
          %s441 = scalar_lea.sflag [#allocation9], %s440
          %s442 = sand.u32 %s154, 1
          %s443 = smul.addr %s442, 8
          %s444 = scalar_lea.vmem [#allocation10], %s443
          %446 = dma.done %s441, 128
        $region64: #{tpu_custom_call.1} parent=51 // pred_fallthru
          _
      $region52: #{tpu_custom_call.1} parent=5 // pred_fallthru
        _
    $region6: #{tpu_custom_call.1} parent=1 // loop_footer
      %s25 = sadd.s32 1, %s21
    $region7: #{tpu_custom_call.1} parent=1 // loop_footer_branch
      %20 = sbr.rel target = $region3
    $region8: #{tpu_custom_call.1} parent=1 // loop_exit
      _
    %447 = vsyncpa [#allocation3], 1
    %s448 = scalar_lea.sflag [#allocation3], 1
    %449 = vsyncpa %s448, 1
    %450 = vsyncpa [#allocation6], 1
    %451 = vsyncpa [#allocation4], 1
    %s452 = scalar_lea.sflag [#allocation4], 1
    %453 = vsyncpa %s452, 1
    %454 = vsyncpa [#allocation9], 1
    %s455 = scalar_lea.sflag [#allocation9], 1
    %456 = vsyncpa %s455, 1

</llo_original>
